<compile_context>
chip_gen: v5e
topology: v5e:2x2
jax: 0.10.0
libtpu: 0.0.40
codegen_flags: <defaults>
</compile_context>

<pallas_src>
import jax
import jax.numpy as jnp
from jax import lax
from jax.experimental import pallas as pl
from jax.experimental.pallas import tpu as pltpu


def _mlp_critic_kernel(obs_ref, w1_ref, b1_ref, w2_ref, b2_ref,
                       w3_ref, b3_ref, out_ref):
    """One batch tile: obs [tb, obs_dim] -> values as a lane-dense (1, tb) row."""
    x = obs_ref[...]                                        # [tb, obs_dim] f32

    # Layer 1: Linear + Tanh (MXU matmul, f32 accumulation).  Row i of h1/h2
    # depends only on row i of obs, so ragged-tile garbage rows stay isolated.
    h1 = jnp.tanh(
        jnp.dot(x, w1_ref[...], preferred_element_type=jnp.float32)
        + b1_ref[...])

    # Layer 2: Linear + (Dropout == identity in eval mode) + Tanh.
    h2 = jnp.tanh(
        jnp.dot(h1, w2_ref[...], preferred_element_type=jnp.float32)
        + b2_ref[...])

    # Output layer (width 1): contract h2's feature axis against the (1, h2)
    # weight row -> (1, tb) with batch on lanes.  Keeps the store unmasked and
    # the output writeback DMA lane-dense (vs. a (tb, 1) column).  Bias is a
    # scalar read from SMEM.
    v = lax.dot_general(w3_ref[...], h2,
                        dimension_numbers=(((1,), (1,)), ((), ())),
                        preferred_element_type=jnp.float32) + b3_ref[0]

    out_ref[...] = v.astype(out_ref.dtype)


def _choose_batch_tile(batch, obs_dim, *, vmem_budget_bytes=24 << 20,
                       max_tile=32768):
    """Largest lane-aligned batch tile that (a) keeps the double-buffered obs
    + output tiles inside a conservative VMEM budget (safe for v7x's 64 MiB /
    32 MiB-scoped VMEM as well as v5e/v6e), and (b) leaves >= 2 grid blocks so
    both v7x TensorCores get work under dimension_semantics=('parallel',)."""
    bytes_per_row = 4 * (2 * obs_dim + 2)     # 2-deep obs tile + 2-deep (1,tb) out, f32
    tile = vmem_budget_bytes // bytes_per_row
    tile = min(tile, max_tile)
    tile = min(tile, -(-batch // 2))          # ceil(batch/2): keep >= 2 blocks
    tile = max(128, (tile // 128) * 128)      # lane-aligned multiple of 128
    return int(tile)


def mlp_critic_forward(obs, params, *, single_shot_max=1024, batch_tile=None,
                       vmem_limit_bytes=48 << 20):
    """obs: [B, obs_dim] float32. Returns value estimates [B] (squeezed).

    * B <= single_shot_max: single pallas_call, no grid, all operands are
      full-array VMEM blocks (b3 in SMEM) -> zero grid/pipelining overhead.
    * B  > single_shot_max: 1-D 'parallel' grid over batch tiles; obs is the
      only per-step stream (auto double-buffered), weights stay VMEM-resident.
      The grid is cdiv-sized (no jnp.pad pass over obs); the ragged last
      block's out-of-range rows produce bounded garbage that the final slice
      discards.
    """
    w1, b1, w2, b2, w3_row, b3 = params
    B, obs_dim = obs.shape
    obs = obs.astype(jnp.float32)

    vmem = pltpu.MemorySpace.VMEM
    smem = pltpu.MemorySpace.SMEM
    weight_specs = [
        pl.BlockSpec(memory_space=vmem),   # w1  [obs_dim, h1]
        pl.BlockSpec(memory_space=vmem),   # b1  [1, h1]
        pl.BlockSpec(memory_space=vmem),   # w2  [h1, h2]
        pl.BlockSpec(memory_space=vmem),   # b2  [1, h2]
        pl.BlockSpec(memory_space=vmem),   # w3  [1, h2]
        pl.BlockSpec(memory_space=smem),   # b3  [1] scalar
    ]

    if B <= single_shot_max:
        out = pl.pallas_call(
            _mlp_critic_kernel,
            out_shape=jax.ShapeDtypeStruct((1, B), jnp.float32),
            in_specs=[pl.BlockSpec(memory_space=vmem)] + weight_specs,
            out_specs=pl.BlockSpec(memory_space=vmem),
        )(obs, w1, b1, w2, b2, w3_row, b3)
        return out[0]

    tb = batch_tile if batch_tile is not None else _choose_batch_tile(B, obs_dim)
    assert tb % 128 == 0, "batch_tile must be a multiple of 128 (lane-aligned output row)"
    num_tiles = pl.cdiv(B, tb)

    out = pl.pallas_call(
        _mlp_critic_kernel,
        out_shape=jax.ShapeDtypeStruct((1, num_tiles * tb), jnp.float32),
        grid=(num_tiles,),
        in_specs=[pl.BlockSpec((tb, obs_dim), lambda i: (i, 0))] + weight_specs,
        out_specs=pl.BlockSpec((1, tb), lambda i: (0, i)),
        compiler_params=pltpu.CompilerParams(
            dimension_semantics=("parallel",),
            vmem_limit_bytes=vmem_limit_bytes),
    )(obs, w1, b1, w2, b2, w3_row, b3)

    return out[0, :B]


def init_params(key, obs_dim, hidden_sizes):
    """Deterministic init mirroring MLPCritic.__init__:
       kaiming_normal_ weights (gain=sqrt(2), fan_in), PyTorch-default biases.
       Hidden weights stored as [in, out]; output layer as a (1, h2) row plus
       a (1,) scalar bias for the kernel's lane-dense contraction."""
    sizes = [obs_dim] + list(hidden_sizes) + [1]
    ws, bs = [], []
    for j in range(len(sizes) - 1):
        fan_in, fan_out = sizes[j], sizes[j + 1]
        key, kw, kb = jax.random.split(key, 3)
        std = (2.0 / fan_in) ** 0.5  # kaiming_normal_ default (a=0, fan_in)
        w = std * jax.random.normal(kw, (fan_in, fan_out), dtype=jnp.float32)
        bound = 1.0 / (fan_in ** 0.5)
        b = jax.random.uniform(kb, (1, fan_out), dtype=jnp.float32,
                               minval=-bound, maxval=bound)
        ws.append(w)
        bs.append(b)
    w1, w2, w3 = ws
    b1, b2, b3 = bs
    return (w1, b1, w2, b2, w3.reshape(1, -1), b3.reshape(-1))


def _reference_forward(obs, params):
    w1, b1, w2, b2, w3_row, b3 = params
    h1 = jnp.tanh(obs @ w1 + b1)
    h2 = jnp.tanh(h1 @ w2 + b2)     # dropout = identity (eval mode)
    return jnp.sum(h2 * w3_row, axis=-1) + b3[0]


if __name__ == "__main__":
    key = jax.random.PRNGKey(0)

    obs_dim = 16
    hidden_sizes = (32, 32)

    key, k_params = jax.random.split(key)
    params = init_params(k_params, obs_dim, hidden_sizes)

    # 1) Small batch -> no-grid single-shot path.
    key, k1 = jax.random.split(key)
    obs_small = jax.random.normal(k1, (8, obs_dim), dtype=jnp.float32)
    v_small = jax.block_until_ready(mlp_critic_forward(obs_small, params))
    v_small_ref = _reference_forward(obs_small, params)
    assert v_small.shape == (8,), v_small.shape
    assert jnp.allclose(v_small, v_small_ref, atol=1e-5, rtol=1e-5), (
        v_small, v_small_ref)

    # 2) Force the gridded path with a ragged last tile (300 = 2*128 + 44),
    #    exercising cdiv-sized blocks and the lane-dense (1, tb) output rows.
    key, k2 = jax.random.split(key)
    obs_mid = jax.random.normal(k2, (300, obs_dim), dtype=jnp.float32)
    v_mid = jax.block_until_ready(
        mlp_critic_forward(obs_mid, params, single_shot_max=0, batch_tile=128))
    v_mid_ref = _reference_forward(obs_mid, params)
    assert v_mid.shape == (300,), v_mid.shape
    assert jnp.allclose(v_mid, v_mid_ref, atol=1e-5, rtol=1e-5), (
        v_mid, v_mid_ref)

    # 3) Auto-sized gridded path: VMEM-budgeted tile, >= 2 'parallel' blocks,
    #    ragged tail (2088 = 2*1024 + 40).
    key, k3 = jax.random.split(key)
    obs_big = jax.random.normal(k3, (2088, obs_dim), dtype=jnp.float32)
    v_big = jax.block_until_ready(mlp_critic_forward(obs_big, params))
    v_big_ref = _reference_forward(obs_big, params)
    assert v_big.shape == (2088,), v_big.shape
    assert jnp.allclose(v_big, v_big_ref, atol=1e-5, rtol=1e-5), (
        v_big, v_big_ref)

    print("KERNEL_OK")
</pallas_src>

<mosaic_0001>
module attributes {stable_mosaic.version = 11 : i64} {
  func.func @_mlp_critic_kernel(%arg0: memref<8x16xf32, #tpu.memory_space<vmem>>, %arg1: memref<16x32xf32, #tpu.memory_space<vmem>>, %arg2: memref<1x32xf32, #tpu.memory_space<vmem>>, %arg3: memref<32x32xf32, #tpu.memory_space<vmem>>, %arg4: memref<1x32xf32, #tpu.memory_space<vmem>>, %arg5: memref<1x32xf32, #tpu.memory_space<vmem>>, %arg6: memref<1xf32, #tpu.memory_space<smem>>, %arg7: memref<1x8xf32, #tpu.memory_space<vmem>>) attributes {dimension_semantics = [], scalar_prefetch = 0 : i64, scratch_operands = 0 : i64, tpu.core_type = #tpu.core_type<tc>} {
    %c0 = arith.constant 0 : index
    %c0_0 = arith.constant 0 : index
    %0 = vector.load %arg0[%c0, %c0_0] : memref<8x16xf32, #tpu.memory_space<vmem>>, vector<8x16xf32>
    %c0_1 = arith.constant 0 : index
    %c0_2 = arith.constant 0 : index
    %1 = vector.load %arg1[%c0_1, %c0_2] : memref<16x32xf32, #tpu.memory_space<vmem>>, vector<16x32xf32>
    %cst = arith.constant dense<0.000000e+00> : vector<8x32xf32>
    %2 = tpu.matmul %0, %1, %cst {dimension_numbers = #tpu.dot_dimension_numbers<[1], [0], [0], [1], [0, 0, 1, 1], [], []>} : vector<8x16xf32>, vector<16x32xf32>, vector<8x32xf32> -> vector<8x32xf32>
    %c0_3 = arith.constant 0 : index
    %c0_4 = arith.constant 0 : index
    %3 = vector.load %arg2[%c0_3, %c0_4] : memref<1x32xf32, #tpu.memory_space<vmem>>, vector<1x32xf32>
    %4 = vector.broadcast %3 : vector<1x32xf32> to vector<8x32xf32>
    %5 = arith.addf %2, %4 : vector<8x32xf32>
    %6 = math.tanh %5 : vector<8x32xf32>
    %c0_5 = arith.constant 0 : index
    %c0_6 = arith.constant 0 : index
    %7 = vector.load %arg3[%c0_5, %c0_6] : memref<32x32xf32, #tpu.memory_space<vmem>>, vector<32x32xf32>
    %cst_7 = arith.constant dense<0.000000e+00> : vector<8x32xf32>
    %8 = tpu.matmul %6, %7, %cst_7 {dimension_numbers = #tpu.dot_dimension_numbers<[1], [0], [0], [1], [0, 0, 1, 1], [], []>} : vector<8x32xf32>, vector<32x32xf32>, vector<8x32xf32> -> vector<8x32xf32>
    %c0_8 = arith.constant 0 : index
    %c0_9 = arith.constant 0 : index
    %9 = vector.load %arg4[%c0_8, %c0_9] : memref<1x32xf32, #tpu.memory_space<vmem>>, vector<1x32xf32>
    %10 = vector.broadcast %9 : vector<1x32xf32> to vector<8x32xf32>
    %11 = arith.addf %8, %10 : vector<8x32xf32>
    %12 = math.tanh %11 : vector<8x32xf32>
    %c0_10 = arith.constant 0 : index
    %c0_11 = arith.constant 0 : index
    %13 = vector.load %arg5[%c0_10, %c0_11] : memref<1x32xf32, #tpu.memory_space<vmem>>, vector<1x32xf32>
    %cst_12 = arith.constant dense<0.000000e+00> : vector<1x8xf32>
    %14 = tpu.matmul %13, %12, %cst_12 {dimension_numbers = #tpu.dot_dimension_numbers<[1], [1], [0], [0], [0, 0, 1, 0], [], []>} : vector<1x32xf32>, vector<8x32xf32>, vector<1x8xf32> -> vector<1x8xf32>
    %c0_13 = arith.constant 0 : index
    %15 = memref.load %arg6[%c0_13] : memref<1xf32, #tpu.memory_space<smem>>
    %16 = vector.broadcast %15 : f32 to vector<1x8xf32>
    %17 = arith.addf %14, %16 : vector<1x8xf32>
    %c0_14 = arith.constant 0 : index
    %c0_15 = arith.constant 0 : index
    %18 = vector.load %arg7[%c0_14, %c0_15] : memref<1x8xf32, #tpu.memory_space<vmem>>, vector<1x8xf32>
    tpu.vector_store %arg7[%c0_14, %c0_15], %17 {strides = array<i32>} : memref<1x8xf32, #tpu.memory_space<vmem>>, vector<1x8xf32>,
    return
  }
}

</mosaic_0001>

<llo_original>
// kernel: tpu_custom_call.1
$region0: #{tpu_custom_call.1}
  #allocation0 [shape = 'u32[]', space=smem, size = 0x4, offset = 0x4, fixed_abs, tag = 'smem constant byte address 0x4 - core index']
  #allocation1 [shape = 'u32[72,128]{1,0:T(1,128)}', space=vmem, size = 0x9000, scoped, tag = 'internal scratch']
  #allocation2 [shape = 'f32[1]{0:T(128)S(6)}', space=smem, size = 0x200, scoped, tag = 'scoped memory for tpu_custom_call.1']
  %s0 = inlined_call_operand.hbm [shape: f32[8,16], index: 0, kind: input, shape index: {}]
  %s1 = inlined_call_operand.hbm [shape: f32[16,32], index: 1, kind: input, shape index: {}]
  %s2 = inlined_call_operand.vmem [shape: f32[1,32], index: 2, kind: input, shape index: {}]
  %s3 = inlined_call_operand.hbm [shape: f32[32,32], index: 3, kind: input, shape index: {}]
  %s4 = inlined_call_operand.vmem [shape: f32[1,32], index: 4, kind: input, shape index: {}]
  %s5 = inlined_call_operand.vmem [shape: f32[1,32], index: 5, kind: input, shape index: {}]
  %s6 = inlined_call_operand.<no memory space> [shape: f32[1], index: 6, kind: input, shape index: {}]
  %s7 = inlined_call_operand.hbm [shape: f32[1,8], index: 7, kind: output, shape index: {}]
  %s8 = sld [smem:[#allocation0]]
  $region50: #{tpu_custom_call.1} parent=0
    _
  %s10 = ssub.s32 1, %s8
  %s11 = scalar_select 0, %s10, %s8
  %12 = sst [smem:[#allocation2]] %s6
  $region1: #{tpu_custom_call.1} parent=0
    #allocation3 [shape = 'u8[4096]{0}', space=vmem, size = 0x1000, scoped, tag = 'input window, operand 0, single buffered']
    #allocation4 [shape = 's32[1]{0}', space=sflag, size = 0x4, scoped, tag = 'scoped memory for tpu_custom_call.1']
    #allocation5 [shape = 's32[1]{0}', space=sflag, size = 0x4, scoped, tag = 'scoped memory for tpu_custom_call.1']
    #allocation6 [shape = 'u8[8192]{0}', space=vmem, size = 0x2000, scoped, tag = 'input window, operand 1, single buffered']
    #allocation7 [shape = 's32[1]{0}', space=sflag, size = 0x4, scoped, tag = 'scoped memory for tpu_custom_call.1']
    #allocation8 [shape = 'u8[16384]{0}', space=vmem, size = 0x4000, scoped, tag = 'input window, operand 3, single buffered']
    #allocation9 [shape = 'u8[512]{0}', space=vmem, size = 0x400, scoped, tag = 'output window, operand 0, single buffered']
    %13 = vsyncpa [#allocation4], 0
    %14 = vsyncpa [#allocation7], 0
    %15 = vsyncpa [#allocation5], 0
    // Predicated region
    $region2: #{tpu_custom_call.1} parent=1 // pred_check
      _
    $region3: #{tpu_custom_call.1} parent=1 // pred_check_branch
      %17 = sbr.rel (0) target = $region5
    $region4: #{tpu_custom_call.1} parent=1 // pred_region
      %19 = vsyncadd [#allocation4], 0
      %s21 = sshll.u32 %s0, 4
      %s22 = int_to_ptr.hbm [resolvable:$true] %s21
      %s23 = sshll.u32 [#allocation3], 4
      %s24 = int_to_ptr.vmem [resolvable:$true] %s23
      %26 = dma.hbm_to_vmem [thread:$0]  %s22, 128, %s24, [#allocation4]
    $region5: #{tpu_custom_call.1} parent=1 // pred_fallthru
      _
    // Predicated region
    $region6: #{tpu_custom_call.1} parent=1 // pred_check
      _
    $region7: #{tpu_custom_call.1} parent=1 // pred_check_branch
      %28 = sbr.rel (0) target = $region9
    $region8: #{tpu_custom_call.1} parent=1 // pred_region
      %30 = vsyncadd [#allocation7], 0
      %s31 = sshll.u32 %s1, 4
      %s32 = int_to_ptr.hbm [resolvable:$true] %s31
      %s33 = sshll.u32 [#allocation6], 4
      %s34 = int_to_ptr.vmem [resolvable:$true] %s33
      %39 = dma.hbm_to_vmem [thread:$0]  %s32, 256, %s34, [#allocation7], 128, 128, 8
    $region9: #{tpu_custom_call.1} parent=1 // pred_fallthru
      _
    // Predicated region
    $region10: #{tpu_custom_call.1} parent=1 // pred_check
      _
    $region11: #{tpu_custom_call.1} parent=1 // pred_check_branch
      %41 = sbr.rel (0) target = $region13
    $region12: #{tpu_custom_call.1} parent=1 // pred_region
      _
    $region13: #{tpu_custom_call.1} parent=1 // pred_fallthru
      _
    // Predicated region
    $region14: #{tpu_custom_call.1} parent=1 // pred_check
      _
    $region15: #{tpu_custom_call.1} parent=1 // pred_check_branch
      %43 = sbr.rel (0) target = $region17
    $region16: #{tpu_custom_call.1} parent=1 // pred_region
      %45 = vsyncadd [#allocation7], 0
      %s46 = sshll.u32 %s3, 4
      %s47 = int_to_ptr.hbm [resolvable:$true] %s46
      %s48 = sshll.u32 [#allocation8], 4
      %s49 = int_to_ptr.vmem [resolvable:$true] %s48
      %54 = dma.hbm_to_vmem [thread:$0]  %s47, 512, %s49, [#allocation7], 128, 128, 8
    $region17: #{tpu_custom_call.1} parent=1 // pred_fallthru
      _
    // Predicated region
    $region18: #{tpu_custom_call.1} parent=1 // pred_check
      _
    $region19: #{tpu_custom_call.1} parent=1 // pred_check_branch
      %56 = sbr.rel (0) target = $region21
    $region20: #{tpu_custom_call.1} parent=1 // pred_region
      _
    $region21: #{tpu_custom_call.1} parent=1 // pred_fallthru
      _
    // Predicated region
    $region22: #{tpu_custom_call.1} parent=1 // pred_check
      _
    $region23: #{tpu_custom_call.1} parent=1 // pred_check_branch
      %58 = sbr.rel (0) target = $region25
    $region24: #{tpu_custom_call.1} parent=1 // pred_region
      _
    $region25: #{tpu_custom_call.1} parent=1 // pred_fallthru
      _
    // Predicated region
    $region26: #{tpu_custom_call.1} parent=1 // pred_check
      _
    $region27: #{tpu_custom_call.1} parent=1 // pred_check_branch
      %60 = sbr.rel (0) target = $region29
    $region28: #{tpu_custom_call.1} parent=1 // pred_region
      _
    $region29: #{tpu_custom_call.1} parent=1 // pred_fallthru
      _
    // Predicated region
    $region30: #{tpu_custom_call.1} parent=1 // pred_check
      _
    $region31: #{tpu_custom_call.1} parent=1 // pred_check_branch
      %62 = sbr.rel (0) target = $region33
    $region32: #{tpu_custom_call.1} parent=1 // pred_region
      %64 = dma.done [#allocation4], 128
    $region33: #{tpu_custom_call.1} parent=1 // pred_fallthru
      _
    // Predicated region
    $region34: #{tpu_custom_call.1} parent=1 // pred_check
      _
    $region35: #{tpu_custom_call.1} parent=1 // pred_check_branch
      %66 = sbr.rel (0) target = $region37
    $region36: #{tpu_custom_call.1} parent=1 // pred_region
      %68 = dma.done [#allocation7], 256
    $region37: #{tpu_custom_call.1} parent=1 // pred_fallthru
      _
    // Predicated region
    $region38: #{tpu_custom_call.1} parent=1 // pred_check
      _
    $region39: #{tpu_custom_call.1} parent=1 // pred_check_branch
      %70 = sbr.rel (0) target = $region41
    $region40: #{tpu_custom_call.1} parent=1 // pred_region
      %72 = dma.done [#allocation7], 512
    $region41: #{tpu_custom_call.1} parent=1 // pred_fallthru
      _
    %v73 = vld [vmem:[#allocation3] sm:$0xff]
    %v74 = vld [vmem:[#allocation6] sm:$0xff]
    %v75 = vld [vmem:[#allocation6 + $0x8] sm:$0xff]
    %v76 = vld [vmem:[%s2] sm:$0x1]
    %v78 = vperm.slane %v76, 0
    %vm80 = vcmask 130048
    %v82 = vsel %vm80, %v73, 0
    %84 = vmatpush.msra.mxu0 0.0
    %85 = vmatpush.msra.mxu0 0.0
    %86 = vmatpush.msra.mxu0 0.0
    %87 = vmatpush.msra.mxu0 0.0
    %88 = vmatpush.msra.mxu0 0.0
    %89 = vmatpush.msra.mxu0 0.0
    %90 = vmatpush.msra.mxu0 0.0
    %91 = vmatpush.msra.mxu0 0.0
    %92 = vmatpush.msra.mxu0 0.0
    %93 = vmatpush.msra.mxu0 0.0
    %94 = vmatpush.msra.mxu0 0.0
    %95 = vmatpush.msra.mxu0 0.0
    %96 = vmatpush.msra.mxu0 0.0
    %97 = vmatpush.msra.mxu0 0.0
    %98 = vmatpush.msra.mxu0 %v75
    %99 = vmatpush.msra.mxu0 %v74
    %100 = vmatmul.f32.gmra.mxu0 %v82
    %v101 = vpop.f32.mrf.mxu0
    %v102 = vadd.f32 %v78, %v101
    %103 = vdwg.mxu0
    %v104 = vtanh.pop %v102
    %v105 = vld [vmem:[#allocation8] sm:$0xff]
    %v106 = vld [vmem:[#allocation8 + $0x8] sm:$0xff]
    %v107 = vld [vmem:[#allocation8 + $0x10] sm:$0xff]
    %v108 = vld [vmem:[#allocation8 + $0x18] sm:$0xff]
    %v109 = vld [vmem:[%s4] sm:$0x1]
    %v111 = vperm.slane %v109, 0
    %vm113 = vcmask 261120
    %v115 = vsel %vm113, %v104, 0
    %117 = vmatpush.msra.mxu0 0.0
    %118 = vmatpush.msra.mxu0 0.0
    %119 = vmatpush.msra.mxu0 0.0
    %120 = vmatpush.msra.mxu0 0.0
    %121 = vmatpush.msra.mxu0 0.0
    %122 = vmatpush.msra.mxu0 0.0
    %123 = vmatpush.msra.mxu0 0.0
    %124 = vmatpush.msra.mxu0 0.0
    %125 = vmatpush.msra.mxu0 0.0
    %126 = vmatpush.msra.mxu0 0.0
    %127 = vmatpush.msra.mxu0 0.0
    %128 = vmatpush.msra.mxu0 0.0
    %129 = vmatpush.msra.mxu0 %v108
    %130 = vmatpush.msra.mxu0 %v107
    %131 = vmatpush.msra.mxu0 %v106
    %132 = vmatpush.msra.mxu0 %v105
    %133 = vmatmul.f32.gmra.mxu0 %v115
    %v134 = vpop.f32.mrf.mxu0
    %v135 = vadd.f32 %v111, %v134
    %136 = vdwg.mxu0
    %v137 = vtanh.pop %v135
    %v138 = vld [vmem:[%s5] sm:$0x1]
    %s139 = sld [smem:[#allocation2]]
    %v140 = vstv %s139
    %v142 = vsel %vm113, %v138, 0
    %v145 = vsel %vm113, %v137, 0
    %147 = vmatpush.xpose.msra.mxu0 0.0
    %148 = vmatpush.xpose.msra.mxu0 0.0
    %149 = vmatpush.xpose.msra.mxu0 0.0
    %150 = vmatpush.xpose.msra.mxu0 0.0
    %151 = vmatpush.xpose.msra.mxu0 0.0
    %152 = vmatpush.xpose.msra.mxu0 0.0
    %153 = vmatpush.xpose.msra.mxu0 0.0
    %154 = vmatpush.xpose.msra.mxu0 0.0
    %155 = vmatpush.xpose.msra.mxu0 0.0
    %156 = vmatpush.xpose.msra.mxu0 0.0
    %157 = vmatpush.xpose.msra.mxu0 0.0
    %158 = vmatpush.xpose.msra.mxu0 0.0
    %159 = vmatpush.xpose.msra.mxu0 0.0
    %160 = vmatpush.xpose.msra.mxu0 0.0
    %161 = vmatpush.xpose.msra.mxu0 0.0
    %162 = vmatpush.xpose.msra.mxu0 %v145
    %163 = vmatmul.f32.gmra.mxu0 %v142
    %v164 = vpop.f32.mrf.mxu0
    %v165 = vadd.f32 %v140, %v164
    %166 = vdwg.mxu0
    %vm167 = vcmask 57344
    %168 = vst.msk [vmem:[#allocation9] sm:$0x1] %vm167, %v165
    // Predicated region
    $region42: #{tpu_custom_call.1} parent=1 // pred_check
      _
    $region43: #{tpu_custom_call.1} parent=1 // pred_check_branch
      %170 = sbr.rel (0) target = $region45
    $region44: #{tpu_custom_call.1} parent=1 // pred_region
      %172 = vsyncadd [#allocation5], 0
      %s174 = sshll.u32 [#allocation9], 4
      %s175 = int_to_ptr.vmem [resolvable:$true] %s174
      %s176 = sshll.u32 %s7, 4
      %s177 = int_to_ptr.hbm [resolvable:$true] %s176
      %179 = dma.vmem_to_hbm [thread:$0]  %s175, 16, %s177, [#allocation5]
    $region45: #{tpu_custom_call.1} parent=1 // pred_fallthru
      _
    // Predicated region
    $region46: #{tpu_custom_call.1} parent=1 // pred_check
      _
    $region47: #{tpu_custom_call.1} parent=1 // pred_check_branch
      %181 = sbr.rel (0) target = $region49
    $region48: #{tpu_custom_call.1} parent=1 // pred_region
      %183 = dma.done [#allocation5], 16
    $region49: #{tpu_custom_call.1} parent=1 // pred_fallthru
      _
    %184 = vsyncpa [#allocation4], 1
    %185 = vsyncpa [#allocation7], 1
    %186 = vsyncpa [#allocation5], 1

</llo_original>
